<compile_context>
chip_gen: v7x
topology: tpu7x:2x2x1
jax: 0.10.0
libtpu: 0.0.40
codegen_flags: <defaults>
</compile_context>

<pallas_src>
import math

import jax
import jax.numpy as jnp
from jax.experimental import pallas as pl
from jax.experimental.pallas import tpu as pltpu

_LANES = 128          # vreg lane width
_MAX_LANE_W = 1024    # cap on output lane width (8 vregs wide)
_MIB = 1024 * 1024


def _linview_copy_kernel(x_ref, o_ref):
    # Pure data movement: stream one lane/sublane-dense tile through VMEM.
    o_ref[...] = x_ref[...]


def _pick_lane_width(total: int) -> int:
    """Largest multiple of 128 dividing `total`, capped at _MAX_LANE_W lanes."""
    cap = min(total, _MAX_LANE_W)
    cand = cap - cap % _LANES
    while cand >= _LANES:
        if total % cand == 0:
            return cand
        cand -= _LANES
    return _LANES  # unreachable for callers that check total % 128 == 0


def _vmem_capacity_bytes() -> int:
    """Physical VMEM of the current chip, with a conservative fallback."""
    try:
        info = pltpu.get_tpu_info()
        cap = getattr(info, "vmem_capacity_bytes", None)
        if cap:
            return int(cap)
    except Exception:
        pass
    return 64 * _MIB  # v7x per-TC physical VMEM: smallest across generations


def lin_view(x: jax.Array,
             *,
             max_block_bytes: int = 8 * _MIB,
             donate: bool = False,
             materialize: bool = True) -> jax.Array:
    """Pallas implementation of LinView.forward: returns x reshaped to (N, -1).

    materialize=False (or an unaligned total) short-circuits to the
    metadata-only jnp.reshape — a flatten of a contiguous array is a bitcast,
    so that path is the true roofline.  donate=True enables in-place output
    aliasing; only use it when the caller actually donates x (jit +
    donate_argnums), otherwise XLA inserts a protective copy.
    """
    n = x.shape[0]
    f = math.prod(x.shape[1:])
    total = n * f
    itemsize = jnp.dtype(x.dtype).itemsize

    # Metadata-only fast path: no copy required, or lane-unaligned total.
    if (not materialize) or total == 0 or total % _LANES != 0:
        # TODO(synk): an in-kernel masked-tail path could also materialize
        # unaligned sizes at the 2*N*F-byte roofline; the plain reshape is
        # metadata-only and strictly cheaper, so it is used instead.
        return jnp.reshape(x, (n, f))

    # Glue (metadata-only): row-major flatten == torch .view(N, -1) on
    # contiguous x; then view the whole tensor as a lane-dense 2-D slab.
    flat = jnp.reshape(x, (total,))
    lane_w = _pick_lane_width(total)
    rows = total // lane_w
    slab = jnp.reshape(flat, (rows, lane_w))

    # Sublane packing: 8 rows for 32-bit, 16 for bf16, 32 for int8.
    sub = 8 * max(1, 4 // itemsize)

    # cdiv tiling: biggest sublane-aligned row tile under the block budget;
    # the (possibly ragged) trailing block is masked by Pallas automatically.
    if rows <= sub:
        row_tile = rows                      # full-extent block dim is legal
    else:
        budget_rows = max(sub, (max_block_bytes // (lane_w * itemsize)) // sub * sub)
        row_tile = min(budget_rows, (rows // sub) * sub)
    grid_steps = pl.cdiv(rows, row_tile)

    # Give the "parallel" axis at least 2 steps so v7x's two TensorCores both
    # stream (harmless single extra step on 1-TC chips).
    if grid_steps == 1 and rows >= 2 * sub:
        row_tile = pl.cdiv(pl.cdiv(rows, 2), sub) * sub
        grid_steps = pl.cdiv(rows, row_tile)

    block_bytes = row_tile * lane_w * itemsize
    # Double-buffered input + output blocks plus headroom, bounded by the
    # chip's physical VMEM minus a safety margin (v7x: 64 - 24 = 40 MiB cap).
    vmem_cap = _vmem_capacity_bytes()
    vmem_limit = int(max(16 * _MIB,
                         min(4 * block_bytes + 4 * _MIB, vmem_cap - 24 * _MIB)))

    out = pl.pallas_call(
        _linview_copy_kernel,
        out_shape=jax.ShapeDtypeStruct((rows, lane_w), x.dtype),
        grid=(grid_steps,),
        in_specs=[pl.BlockSpec((row_tile, lane_w), lambda i: (i, 0))],
        out_specs=pl.BlockSpec((row_tile, lane_w), lambda i: (i, 0)),
        compiler_params=pltpu.CompilerParams(
            dimension_semantics=("parallel",),
            vmem_limit_bytes=vmem_limit,
        ),
        cost_estimate=pl.CostEstimate(flops=0, transcendentals=0,
                                      bytes_accessed=2 * total * itemsize),
        # Only alias when the caller genuinely donates the input buffer.
        input_output_aliases=({0: 0} if donate else {}),
    )(slab)

    # Glue: restore the (N, C*H*W) view — metadata only.
    return jnp.reshape(out, (n, f))


if __name__ == "__main__":
    key = jax.random.PRNGKey(0)
    # Small NCHW input consistent with the module: batch=2, channels=4, 16x16 spatial.
    x = jax.random.normal(key, (2, 4, 16, 16), dtype=jnp.float32)

    y = jax.block_until_ready(lin_view(x))

    # Reference: plain JAX reshape == torch .view(N, -1) on a contiguous tensor.
    y_ref = jnp.reshape(x, (x.shape[0], -1))
    assert y.shape == (2, 4 * 16 * 16), y.shape
    assert y.dtype == x.dtype
    assert bool(jnp.array_equal(y, y_ref))

    print("KERNEL_OK")
</pallas_src>

<mosaic_0001>
module attributes {stable_mosaic.version = 11 : i64} {
  func.func @_linview_copy_kernel(%arg0: i32, %arg1: memref<2x1024xf32, #tpu.memory_space<vmem>>, %arg2: memref<2x1024xf32, #tpu.memory_space<vmem>>) attributes {dimension_semantics = [#tpu.dimension_semantics<parallel>], iteration_bounds = array<i64: 1>, scalar_prefetch = 0 : i64, scratch_operands = 0 : i64, tpu.core_type = #tpu.core_type<tc>, window_params = [{transform_indices = @transform_0, window_bounds = array<i64: 2, 1024>}, {transform_indices = @transform_1, window_bounds = array<i64: 2, 1024>}]} {
    %c0 = arith.constant 0 : index
    %c0_0 = arith.constant 0 : index
    %0 = vector.load %arg1[%c0, %c0_0] : memref<2x1024xf32, #tpu.memory_space<vmem>>, vector<2x1024xf32>
    %c0_1 = arith.constant 0 : index
    %c0_2 = arith.constant 0 : index
    %1 = vector.load %arg2[%c0_1, %c0_2] : memref<2x1024xf32, #tpu.memory_space<vmem>>, vector<2x1024xf32>
    tpu.vector_store %arg2[%c0_1, %c0_2], %0 {strides = array<i32>} : memref<2x1024xf32, #tpu.memory_space<vmem>>, vector<2x1024xf32>,
    return
  }
  func.func @transform_0(%arg0: i32) -> (i32, i32) {
    %c0_i32 = arith.constant 0 : i32
    %c0_i32_0 = arith.constant 0 : i32
    return %arg0, %c0_i32 : i32, i32
  }
  func.func @transform_1(%arg0: i32) -> (i32, i32) {
    %c0_i32 = arith.constant 0 : i32
    %c0_i32_0 = arith.constant 0 : i32
    return %arg0, %c0_i32 : i32, i32
  }
}

</mosaic_0001>

<llo_original>
// kernel: tpu_custom_call.1
$region0: #{tpu_custom_call.1}
  #allocation0 [shape = 'u32[]', space=smem, size = 0x4, offset = 0x4, fixed_abs, tag = 'smem constant byte address 0x4 - core index']
  #allocation1 [shape = 'u32[144,128]{1,0:T(1,128)}', space=vmem, size = 0x12000, scoped, tag = 'internal scratch']
  %s0 = inlined_call_operand.hbm [shape: f32[2,1024], index: 0, kind: input, shape index: {}]
  %s1 = inlined_call_operand.hbm [shape: f32[2,1024], index: 1, kind: output, shape index: {}]
  %s2 = sld [smem:[#allocation0]]
  $region18: #{tpu_custom_call.1} parent=0
    _
  %s4 = ssub.s32 1, %s2
  %s5 = scalar_select 0, %s4, %s2
  $region1: #{tpu_custom_call.1} parent=0
    #allocation2 [shape = 'u8[8192]{0}', space=vmem, size = 0x2000, scoped, tag = 'input window, operand 0, single buffered']
    #allocation3 [shape = 's32[1]{0}', space=sflag, size = 0x4, scoped, tag = 'scoped memory for tpu_custom_call.1']
    #allocation4 [shape = 's32[1]{0}', space=sflag, size = 0x4, scoped, tag = 'scoped memory for tpu_custom_call.1']
    #allocation5 [shape = 'u8[8192]{0}', space=vmem, size = 0x2000, scoped, tag = 'output window, operand 0, single buffered']
    %6 = vsyncpa [#allocation3], 0
    %7 = vsyncpa [#allocation4], 0
    // Predicated region
    $region2: #{tpu_custom_call.1} parent=1 // pred_check
      _
    $region3: #{tpu_custom_call.1} parent=1 // pred_check_branch
      %9 = sbr.rel (0) target = $region5
    $region4: #{tpu_custom_call.1} parent=1 // pred_region
      %s11 = ssub.s32 256, 256
      %12 = vsyncadd [#allocation3], %s11
      %s14 = sshll.u32 [#allocation2], 4
      %s15 = int_to_ptr.vmem [resolvable:$true] %s14
      %17 = dma.hbm_to_vmem [thread:$0]  %s0, 256, %s15, [#allocation3]
    $region5: #{tpu_custom_call.1} parent=1 // pred_fallthru
      _
    // Predicated region
    $region6: #{tpu_custom_call.1} parent=1 // pred_check
      _
    $region7: #{tpu_custom_call.1} parent=1 // pred_check_branch
      %19 = sbr.rel (0) target = $region9
    $region8: #{tpu_custom_call.1} parent=1 // pred_region
      %20 = dma.done [#allocation3], 256
    $region9: #{tpu_custom_call.1} parent=1 // pred_fallthru
      _
    %v21 = vld [vmem:[#allocation2] sm:$0xff]
    %v22 = vld [vmem:[#allocation2 + $0x8] sm:$0xff]
    %23 = vst [vmem:[#allocation5] sm:$0xff] %v21
    %24 = vst [vmem:[#allocation5 + $0x8] sm:$0xff] %v22
    // Predicated region
    $region10: #{tpu_custom_call.1} parent=1 // pred_check
      _
    $region11: #{tpu_custom_call.1} parent=1 // pred_check_branch
      %26 = sbr.rel (0) target = $region13
    $region12: #{tpu_custom_call.1} parent=1 // pred_region
      %s28 = ssub.s32 256, 256
      %29 = vsyncadd [#allocation4], %s28
      %s31 = sshll.u32 [#allocation5], 4
      %s32 = int_to_ptr.vmem [resolvable:$true] %s31
      %34 = dma.vmem_to_hbm [thread:$0]  %s32, 256, %s1, [#allocation4]
    $region13: #{tpu_custom_call.1} parent=1 // pred_fallthru
      _
    // Predicated region
    $region14: #{tpu_custom_call.1} parent=1 // pred_check
      _
    $region15: #{tpu_custom_call.1} parent=1 // pred_check_branch
      %36 = sbr.rel (0) target = $region17
    $region16: #{tpu_custom_call.1} parent=1 // pred_region
      %37 = dma.done [#allocation4], 256
    $region17: #{tpu_custom_call.1} parent=1 // pred_fallthru
      _
    %38 = vsyncpa [#allocation3], 1
    %39 = vsyncpa [#allocation4], 1

</llo_original>
